<compile_context>
chip_gen: v5e
topology: v5e:2x2
jax: 0.10.0
libtpu: 0.0.40
codegen_flags: <defaults>
</compile_context>

<pallas_src>
import math

import numpy as np

import jax
import jax.numpy as jnp
from jax.experimental import pallas as pl
from jax.experimental.pallas import tpu as pltpu


def _round_up(x, m):
    return ((x + m - 1) // m) * m


def _make_group_lasso_kernel(tile_d, hoisted):
    """Kernel factory.

    Refs: x (tB, tD), init (1, Dp|tD), w (Dp|tD, G), sqrtg (1, G),
          out (tB, 1), acc scratch (tB, G).
    """

    def kernel(x_ref, init_ref, w_ref, sqrtg_ref, o_ref, acc_ref):
        k = pl.program_id(1)

        @pl.when(k == 0)
        def _zero():
            acc_ref[...] = jnp.zeros_like(acc_ref)

        if hoisted:
            # init / W live whole in VMEM (fetched once across the grid);
            # slice the current D window out of them.
            off = pl.multiple_of(k * tile_d, 128)
            init = init_ref[:, pl.ds(off, tile_d)]
            w = w_ref[pl.ds(off, tile_d), :]
        else:
            init = init_ref[...]
            w = w_ref[...]

        diff = x_ref[...].astype(jnp.float32) - init                 # (tB, tD)
        acc_ref[...] += jnp.dot(diff * diff, w,
                                preferred_element_type=jnp.float32)  # (tB, G)

        @pl.when(k == pl.num_programs(1) - 1)
        def _finish():
            # sqrt(||diff_g||^2) * sqrt(|g|), summed over groups.
            o_ref[...] = jnp.sum(jnp.sqrt(acc_ref[...]) * sqrtg_ref[...],
                                 axis=-1, keepdims=True)

    return kernel


# Host-side cache of (membership, sqrt(|g|)) NumPy arrays keyed on the group
# structure and padded D. NumPy (not device arrays) so the cache never pins
# device memory.
_W_CACHE = {}


def _membership_and_scale(groups, d_padded):
    key = (tuple(tuple(int(i) for i in g) for g in groups), int(d_padded))
    cached = _W_CACHE.get(key)
    if cached is None:
        g_count = len(groups)
        w = np.zeros((d_padded, g_count), dtype=np.float32)
        s = np.zeros((1, g_count), dtype=np.float32)
        for gi, g in enumerate(groups):
            w[np.asarray(g, dtype=np.int64), gi] = 1.0
            s[0, gi] = math.sqrt(len(g))
        cached = (w, s)
        _W_CACHE[key] = cached
    return cached


def _vmem_capacity_bytes():
    try:
        return int(pltpu.get_tpu_info().vmem_capacity_bytes)
    except Exception:
        return 64 * 1024 * 1024  # conservative default: v7x per-TensorCore VMEM


def group_lasso_penalty(X, init_point, groups, *, tile_b=512, tile_d=None):
    """X: batch_shape x 1 x dim. init_point: (1, dim) or (dim,).

    Returns batch_shape float32:
        sum_g sqrt(|g|) * || (X.squeeze(-2) - init_point)[..., g] ||_2
    """
    if X.shape[-2] != 1:
        raise NotImplementedError("group-lasso has not been implemented for q>1 yet.")
    batch_shape = X.shape[:-2]
    D = X.shape[-1]
    G = len(groups)

    x2d = X.reshape(-1, D)                              # (B, D), q-dim squeezed
    if x2d.dtype not in (jnp.float32, jnp.bfloat16):
        x2d = x2d.astype(jnp.float32)                   # bf16 stays bf16 (upcast in-kernel)
    B = x2d.shape[0]
    init2d = jnp.reshape(init_point, (1, D)).astype(jnp.float32)

    if B == 0 or G == 0:
        return jnp.zeros(batch_shape, dtype=jnp.float32)

    x_itemsize = jnp.dtype(x2d.dtype).itemsize
    Gp = _round_up(G, 128)                              # lane-padded width of W / acc
    vmem_cap = _vmem_capacity_bytes()
    if tile_d is None:
        # 128 MiB-VMEM parts (v5e/v6e) take bigger reduction tiles safely.
        tile_d = 4096 if vmem_cap >= (100 << 20) else 2048

    Dp128 = _round_up(D, 128)
    if Dp128 <= tile_d:
        # Single reduction step: block == full feature dim, no D padding needed.
        tD, Dp, n_k = D, D, 1
    else:
        tD = tile_d
        Dp = _round_up(D, tD)
        n_k = Dp // tD

    # Hoist W (and init) fully into VMEM (constant block index => fetched once)
    # when the membership matrix is small enough; otherwise stream per D tile.
    hoist = (n_k > 1) and (_round_up(Dp, 8) * Gp * 4 <= 8 * 1024 * 1024)

    # Batch tile: sublane-aligned, bigger when the kernel is overhead-bound
    # (single D step), bounded by VMEM budgets for the double-buffered x
    # stream and the (tB, G) accumulator.
    vmem_lane = _round_up(tD, 128)
    tb_x_cap = max(8, ((8 * 1024 * 1024) // (vmem_lane * x_itemsize)) // 8 * 8)
    tb_acc_cap = max(8, ((8 * 1024 * 1024) // (Gp * 4)) // 8 * 8)
    tb_target = 4096 if n_k == 1 else tile_b
    tB = min(tb_target, tb_x_cap, tb_acc_cap, _round_up(B, 8))
    # Keep >=2 batch tiles when possible so the "parallel" axis can shard
    # across v7x's two TensorCores (harmless on single-TC v5e/v6e).
    if B > 8 and pl.cdiv(B, tB) == 1:
        tB = _round_up(pl.cdiv(B, 2), 8)
    n_b = pl.cdiv(B, tB)

    # Only the reduction (D) dimension ever needs explicit zero padding; batch
    # edge blocks are row-independent so Pallas partial blocks are safe there.
    if Dp != D:
        x_in = jnp.pad(x2d, ((0, 0), (0, Dp - D)))
        init_in = jnp.pad(init2d, ((0, 0), (0, Dp - D)))
    else:
        x_in, init_in = x2d, init2d

    w_np, sqrtg_np = _membership_and_scale(groups, Dp)
    w = jnp.asarray(w_np)                               # (Dp, G), exact 0/1
    sqrtg = jnp.asarray(sqrtg_np)                       # (1, G)

    if hoist:
        init_spec = pl.BlockSpec((1, Dp), lambda i, k: (0, 0))
        w_spec = pl.BlockSpec((Dp, G), lambda i, k: (0, 0))
    else:
        init_spec = pl.BlockSpec((1, tD), lambda i, k: (0, k))
        w_spec = pl.BlockSpec((tD, G), lambda i, k: (k, 0))

    # VMEM footprint estimate (double-buffered where applicable) -> limit that
    # stays within v7x's 64 MiB physical VMEM while allowing big tiles.
    bytes_x = 2 * tB * vmem_lane * x_itemsize
    bytes_w = (1 if hoist else 2) * _round_up(Dp if hoist else tD, 8) * Gp * 4
    bytes_init = (1 if hoist else 2) * 8 * _round_up(Dp if hoist else tD, 128) * 4
    bytes_misc = 8 * Gp * 4 + tB * Gp * 4 + 2 * tB * 128 * 4  # sqrtg + acc + out
    footprint = bytes_x + bytes_w + bytes_init + bytes_misc
    vmem_limit = int(min(max(footprint + (4 << 20), 32 << 20),
                         (vmem_cap * 3) // 4, 96 << 20))

    out = pl.pallas_call(
        _make_group_lasso_kernel(tD, hoist),
        out_shape=jax.ShapeDtypeStruct((B, 1), jnp.float32),
        grid_spec=pltpu.PrefetchScalarGridSpec(
            num_scalar_prefetch=0,
            grid=(n_b, n_k),
            in_specs=[
                pl.BlockSpec((tB, tD), lambda i, k: (i, k)),   # x tile
                init_spec,                                     # reference point
                w_spec,                                        # 0/1 membership
                pl.BlockSpec((1, G), lambda i, k: (0, 0)),     # sqrt(|g|) per group
            ],
            out_specs=pl.BlockSpec((tB, 1), lambda i, k: (i, 0)),
            scratch_shapes=[pltpu.VMEM((tB, G), jnp.float32)],
        ),
        compiler_params=pltpu.CompilerParams(
            dimension_semantics=("parallel", "arbitrary"),
            vmem_limit_bytes=vmem_limit,
        ),
    )(x_in, init_in, w, sqrtg)

    return out[:, 0].reshape(batch_shape)


def _reference(X, init_point, groups):
    diff = X[..., 0, :] - jnp.reshape(init_point, (1, -1))
    terms = [math.sqrt(len(g)) * jnp.linalg.norm(diff[..., jnp.asarray(g)], axis=-1)
             for g in groups]
    return jnp.sum(jnp.stack(terms, axis=-1), axis=-1)


if __name__ == "__main__":
    # Case 1: the canonical small BoTorch-like shape.
    key = jax.random.PRNGKey(0)
    batch, dim = 2, 16
    groups = [[0, 1, 2], [3, 4, 5, 6], [7, 8], [9, 10, 11, 12, 13, 14, 15]]

    kx, ki = jax.random.split(key)
    X = jax.random.normal(kx, (batch, 1, dim), dtype=jnp.float32)
    init_point = jax.random.normal(ki, (1, dim), dtype=jnp.float32)

    out = jax.block_until_ready(group_lasso_penalty(X, init_point, groups))
    ref = _reference(X, init_point, groups)
    assert out.shape == (batch,)
    assert jnp.allclose(out, ref, rtol=1e-5, atol=1e-5), (out, ref)

    # Case 2: unaligned batch/dim exercising the multi-batch-tile edge-block path.
    batch2, dim2 = 20, 40
    groups2 = [list(range(0, 7)), list(range(7, 19)), list(range(19, 40))]
    kx2, ki2 = jax.random.split(jax.random.PRNGKey(1))
    X2 = jax.random.normal(kx2, (batch2, 1, dim2), dtype=jnp.float32)
    init2 = jax.random.normal(ki2, (1, dim2), dtype=jnp.float32)
    out2 = jax.block_until_ready(group_lasso_penalty(X2, init2, groups2))
    ref2 = _reference(X2, init2, groups2)
    assert out2.shape == (batch2,)
    assert jnp.allclose(out2, ref2, rtol=1e-5, atol=1e-5), (out2, ref2)

    print("KERNEL_OK")
</pallas_src>

<mosaic_0001>
module attributes {stable_mosaic.version = 11 : i64} {
  func.func @kernel(%arg0: i32, %arg1: i32, %arg2: memref<8x16xf32, #tpu.memory_space<vmem>>, %arg3: memref<1x16xf32, #tpu.memory_space<vmem>>, %arg4: memref<16x4xf32, #tpu.memory_space<vmem>>, %arg5: memref<1x4xf32, #tpu.memory_space<vmem>>, %arg6: memref<8x1xf32, #tpu.memory_space<vmem>>, %arg7: memref<8x4xf32, #tpu.memory_space<vmem>>) attributes {dimension_semantics = [#tpu.dimension_semantics<parallel>, #tpu.dimension_semantics<arbitrary>], iteration_bounds = array<i64: 1, 1>, scalar_prefetch = 0 : i64, scratch_operands = 1 : i64, tpu.core_type = #tpu.core_type<tc>, window_params = [{transform_indices = @transform_0, window_bounds = array<i64: 8, 16>}, {transform_indices = @transform_1, window_bounds = array<i64: 1, 16>}, {transform_indices = @transform_2, window_bounds = array<i64: 16, 4>}, {pipeline_mode = #tpu.pipeline_mode<synchronous>, transform_indices = @transform_3, window_bounds = array<i64: 1, 4>}, {transform_indices = @transform_4, window_bounds = array<i64: 8, 1>}]} {
    %c0_i32 = arith.constant 0 : i32
    %0 = arith.cmpi eq, %arg1, %c0_i32 : i32
    %1 = arith.extui %0 : i1 to i32
    %c0_i32_0 = arith.constant 0 : i32
    %2 = arith.cmpi ne, %1, %c0_i32_0 : i32
    scf.if %2 {
      %cst_12 = arith.constant 0.000000e+00 : f32
      %16 = vector.broadcast %cst_12 : f32 to vector<8x4xf32>
      %c0_13 = arith.constant 0 : index
      %c0_14 = arith.constant 0 : index
      %17 = vector.load %arg7[%c0_13, %c0_14] : memref<8x4xf32, #tpu.memory_space<vmem>>, vector<8x4xf32>
      tpu.vector_store %arg7[%c0_13, %c0_14], %16 {strides = array<i32>} : memref<8x4xf32, #tpu.memory_space<vmem>>, vector<8x4xf32>,
    } else {
    }
    %c0 = arith.constant 0 : index
    %c0_1 = arith.constant 0 : index
    %3 = vector.load %arg3[%c0, %c0_1] : memref<1x16xf32, #tpu.memory_space<vmem>>, vector<1x16xf32>
    %c0_2 = arith.constant 0 : index
    %c0_3 = arith.constant 0 : index
    %4 = vector.load %arg4[%c0_2, %c0_3] : memref<16x4xf32, #tpu.memory_space<vmem>>, vector<16x4xf32>
    %c0_4 = arith.constant 0 : index
    %c0_5 = arith.constant 0 : index
    %5 = vector.load %arg2[%c0_4, %c0_5] : memref<8x16xf32, #tpu.memory_space<vmem>>, vector<8x16xf32>
    %6 = vector.broadcast %3 : vector<1x16xf32> to vector<8x16xf32>
    %7 = arith.subf %5, %6 : vector<8x16xf32>
    %c0_6 = arith.constant 0 : index
    %c0_7 = arith.constant 0 : index
    %8 = vector.load %arg7[%c0_6, %c0_7] : memref<8x4xf32, #tpu.memory_space<vmem>>, vector<8x4xf32>
    %9 = arith.mulf %7, %7 : vector<8x16xf32>
    %cst = arith.constant dense<0.000000e+00> : vector<8x4xf32>
    %10 = tpu.matmul %9, %4, %cst {dimension_numbers = #tpu.dot_dimension_numbers<[1], [0], [0], [1], [0, 0, 1, 1], [], []>} : vector<8x16xf32>, vector<16x4xf32>, vector<8x4xf32> -> vector<8x4xf32>
    %11 = arith.addf %8, %10 : vector<8x4xf32>
    %c0_8 = arith.constant 0 : index
    %c0_9 = arith.constant 0 : index
    %12 = vector.load %arg7[%c0_8, %c0_9] : memref<8x4xf32, #tpu.memory_space<vmem>>, vector<8x4xf32>
    tpu.vector_store %arg7[%c0_8, %c0_9], %11 {strides = array<i32>} : memref<8x4xf32, #tpu.memory_space<vmem>>, vector<8x4xf32>,
    %c0_i32_10 = arith.constant 0 : i32
    %13 = arith.cmpi eq, %arg1, %c0_i32_10 : i32
    %14 = arith.extui %13 : i1 to i32
    %c0_i32_11 = arith.constant 0 : i32
    %15 = arith.cmpi ne, %14, %c0_i32_11 : i32
    scf.if %15 {
      %c0_12 = arith.constant 0 : index
      %c0_13 = arith.constant 0 : index
      %16 = vector.load %arg7[%c0_12, %c0_13] : memref<8x4xf32, #tpu.memory_space<vmem>>, vector<8x4xf32>
      %17 = math.sqrt %16 : vector<8x4xf32>
      %c0_14 = arith.constant 0 : index
      %c0_15 = arith.constant 0 : index
      %18 = vector.load %arg5[%c0_14, %c0_15] : memref<1x4xf32, #tpu.memory_space<vmem>>, vector<1x4xf32>
      %19 = vector.broadcast %18 : vector<1x4xf32> to vector<8x4xf32>
      %20 = arith.mulf %17, %19 : vector<8x4xf32>
      %cst_16 = arith.constant dense<0.000000e+00> : vector<8xf32>
      %21 = vector.multi_reduction <add>, %20, %cst_16 [1] : vector<8x4xf32> to vector<8xf32>
      %22 = vector.shape_cast %21 : vector<8xf32> to vector<8x1xf32>
      %c0_17 = arith.constant 0 : index
      %c0_18 = arith.constant 0 : index
      %23 = vector.load %arg6[%c0_17, %c0_18] : memref<8x1xf32, #tpu.memory_space<vmem>>, vector<8x1xf32>
      tpu.vector_store %arg6[%c0_17, %c0_18], %22 {strides = array<i32>} : memref<8x1xf32, #tpu.memory_space<vmem>>, vector<8x1xf32>,
    } else {
    }
    return
  }
  func.func @transform_0(%arg0: i32, %arg1: i32) -> (i32, i32) {
    %c0_i32 = arith.constant 0 : i32
    return %arg0, %arg1 : i32, i32
  }
  func.func @transform_1(%arg0: i32, %arg1: i32) -> (i32, i32) {
    %c0_i32 = arith.constant 0 : i32
    %c0_i32_0 = arith.constant 0 : i32
    return %c0_i32, %arg1 : i32, i32
  }
  func.func @transform_2(%arg0: i32, %arg1: i32) -> (i32, i32) {
    %c0_i32 = arith.constant 0 : i32
    %c0_i32_0 = arith.constant 0 : i32
    return %arg1, %c0_i32 : i32, i32
  }
  func.func @transform_3(%arg0: i32, %arg1: i32) -> (i32, i32) {
    %c0_i32 = arith.constant 0 : i32
    %c0_i32_0 = arith.constant 0 : i32
    %c0_i32_1 = arith.constant 0 : i32
    return %c0_i32, %c0_i32_0 : i32, i32
  }
  func.func @transform_4(%arg0: i32, %arg1: i32) -> (i32, i32) {
    %c0_i32 = arith.constant 0 : i32
    %c0_i32_0 = arith.constant 0 : i32
    return %arg0, %c0_i32 : i32, i32
  }
}

</mosaic_0001>

<llo_original>
// kernel: tpu_custom_call.1
$region0: #{tpu_custom_call.1}
  #allocation0 [shape = 'u32[]', space=smem, size = 0x4, offset = 0x4, fixed_abs, tag = 'smem constant byte address 0x4 - core index']
  #allocation1 [shape = 'u32[72,128]{1,0:T(1,128)}', space=vmem, size = 0x9000, scoped, tag = 'internal scratch']
  #allocation2 [shape = 'f32[8,4]{1,0:T(8,128)}', space=vmem, size = 0x1000, scoped, tag = 'scratch operand']
  %s0 = inlined_call_operand.vmem [shape: f32[2,16], index: 0, kind: input, shape index: {}]
  %s1 = inlined_call_operand.vmem [shape: f32[1,16], index: 1, kind: input, shape index: {}]
  %s2 = inlined_call_operand.vmem [shape: f32[16,4], index: 2, kind: input, shape index: {}]
  %s3 = inlined_call_operand.vmem [shape: f32[1,4], index: 3, kind: input, shape index: {}]
  %s4 = inlined_call_operand.vmem [shape: f32[2,1], index: 4, kind: output, shape index: {}]
  %s5 = sld [smem:[#allocation0]]
  $region64: #{tpu_custom_call.1} parent=0
    _
  %s7 = ssub.s32 1, %s5
  %s8 = scalar_select 0, %s7, %s5
  $region1: #{tpu_custom_call.1} parent=0
    #allocation3 [shape = 'u8[4096]{0}', space=vmem, size = 0x1000, scoped, tag = 'output window, operand 0, single buffered']
    // Predicated region
    $region2: #{tpu_custom_call.1} parent=1 // pred_check
      _
    $region3: #{tpu_custom_call.1} parent=1 // pred_check_branch
      %10 = sbr.rel (0) target = $region5
    $region4: #{tpu_custom_call.1} parent=1 // pred_region
      _
    $region5: #{tpu_custom_call.1} parent=1 // pred_fallthru
      _
    // Predicated region
    $region6: #{tpu_custom_call.1} parent=1 // pred_check
      _
    $region7: #{tpu_custom_call.1} parent=1 // pred_check_branch
      %12 = sbr.rel (0) target = $region9
    $region8: #{tpu_custom_call.1} parent=1 // pred_region
      _
    $region9: #{tpu_custom_call.1} parent=1 // pred_fallthru
      _
    // Predicated region
    $region10: #{tpu_custom_call.1} parent=1 // pred_check
      _
    $region11: #{tpu_custom_call.1} parent=1 // pred_check_branch
      %14 = sbr.rel (0) target = $region13
    $region12: #{tpu_custom_call.1} parent=1 // pred_region
      _
    $region13: #{tpu_custom_call.1} parent=1 // pred_fallthru
      _
    // Predicated region
    $region14: #{tpu_custom_call.1} parent=1 // pred_check
      _
    $region15: #{tpu_custom_call.1} parent=1 // pred_check_branch
      %16 = sbr.rel (0) target = $region17
    $region16: #{tpu_custom_call.1} parent=1 // pred_region
      _
    $region17: #{tpu_custom_call.1} parent=1 // pred_fallthru
      _
    %p17 = scmp.eq.s32.totalorder 0, 0
    // Predicated region
    $region18: #{tpu_custom_call.1} parent=1 // pred_check
      %p18 = pneg %p17
    $region19: #{tpu_custom_call.1} parent=1 // pred_check_branch
      %20 = sbr.rel (%p18) target = $region21
    $region20: #{tpu_custom_call.1} parent=1 // pred_region
      %vm21 = vcmask 31744
      %22 = vst.msk [vmem:[#allocation2] sm:$0xff] %vm21, 0.0
    $region21: #{tpu_custom_call.1} parent=1 // pred_fallthru
      _
    %v23 = vld [vmem:[%s1] sm:$0x1]
    %v24 = vld [vmem:[%s2] sm:$0xff]
    %v25 = vld [vmem:[%s2 + $0x8] sm:$0xff]
    %v26 = vld [vmem:[%s0] sm:$0xff]
    %v28 = vperm.slane %v23, 0
    %v30 = vsub.f32 %v26, %v28
    %v31 = vld [vmem:[#allocation2] sm:$0xff]
    %v32 = vmul.f32 %v30, %v30
    %vm33 = vcmask 130048
    %v35 = vsel %vm33, %v32, 0
    %37 = vmatpush.msra.mxu0 0.0
    %38 = vmatpush.msra.mxu0 0.0
    %39 = vmatpush.msra.mxu0 0.0
    %40 = vmatpush.msra.mxu0 0.0
    %41 = vmatpush.msra.mxu0 0.0
    %42 = vmatpush.msra.mxu0 0.0
    %43 = vmatpush.msra.mxu0 0.0
    %44 = vmatpush.msra.mxu0 0.0
    %45 = vmatpush.msra.mxu0 0.0
    %46 = vmatpush.msra.mxu0 0.0
    %47 = vmatpush.msra.mxu0 0.0
    %48 = vmatpush.msra.mxu0 0.0
    %49 = vmatpush.msra.mxu0 0.0
    %50 = vmatpush.msra.mxu0 0.0
    %51 = vmatpush.msra.mxu0 %v25
    %52 = vmatpush.msra.mxu0 %v24
    %53 = vmatmul.f32.gmra.mxu0 %v35
    %v54 = vpop.f32.mrf.mxu0
    %v55 = vadd.f32 0.0, %v54
    %56 = vdwg.mxu0
    %v57 = vadd.f32 %v31, %v55
    %vm58 = vcmask 31744
    %59 = vst.msk [vmem:[#allocation2] sm:$0xff] %vm58, %v57
    // Predicated region
    $region22: #{tpu_custom_call.1} parent=1 // pred_check
      %p60 = pneg %p17
    $region23: #{tpu_custom_call.1} parent=1 // pred_check_branch
      %62 = sbr.rel (%p60) target = $region25
    $region24: #{tpu_custom_call.1} parent=1 // pred_region
      %v63 = vld [vmem:[#allocation2] sm:$0xff]
      %v64 = vrsqrt.pop %v63
      %v65 = vmul.f32 %v64, %v63
      %v66 = vmul.f32 %v65, %v64
      %v67 = vmul.f32 0.5, %v66
      %v68 = vsub.f32 1.5, %v67
      %v69 = vmul.f32 %v64, %v68
      %v70 = vmul.f32 %v63, %v69
      %vm71 = vcmp.eq.f32.partialorder %v63, inf
      %v72 = vsel %vm71, %v63, %v70
      %vm73 = vcmp.eq.f32.partialorder %v63, 0.0
      %v74 = vand.u32 %v63, 2147483648
      %v75 = vsel %vm73, %v74, %v72
      %v76 = vld [vmem:[%s3] sm:$0x1]
      %v78 = vperm.slane %v76, 0
      %v80 = vmul.f32 %v75, %v78
      %v81 = vsel %vm58, %v80, 0.0
      %82 = vadd.xlane.f32.xlu0 %v81
      %v83 = vpop.xlane.xlu0 %82
      %vm84 = vcmask 7168
      %85 = vst.msk [vmem:[#allocation3] sm:$0xff] %vm84, %v83
    $region25: #{tpu_custom_call.1} parent=1 // pred_fallthru
      _
    // Predicated region
    $region26: #{tpu_custom_call.1} parent=1 // pred_check
      _
    $region27: #{tpu_custom_call.1} parent=1 // pred_check_branch
      %87 = sbr.rel (0) target = $region29
    $region28: #{tpu_custom_call.1} parent=1 // pred_region
      // Predicated region
      $region30: #{tpu_custom_call.1} parent=28 // pred_check
        _
      $region31: #{tpu_custom_call.1} parent=28 // pred_check_branch
        %89 = sbr.rel (0) target = $region33
      $region32: #{tpu_custom_call.1} parent=28 // pred_region
        // Predicated region
        $region34: #{tpu_custom_call.1} parent=32 // pred_check
          _
        $region35: #{tpu_custom_call.1} parent=32 // pred_check_branch
          %91 = sbr.rel target = $region37
        $region36: #{tpu_custom_call.1} parent=32 // pred_region
          // Predicated region
          $region49: #{tpu_custom_call.1} parent=36 // pred_check
            _
          $region50: #{tpu_custom_call.1} parent=36 // pred_check_branch
            %107 = sbr.rel (0) target = $region52
          $region51: #{tpu_custom_call.1} parent=36 // pred_region
            %s109 = ssub.s32 4, 1
            loop: start=0, step=1, limit=1
            $region53: #{tpu_custom_call.1} parent=51 // loop_pre_header
              _
            $region54: #{tpu_custom_call.1} parent=51 // loop_header
              %s111 = sphi 0, %s115
              %p112 = scmp.ge.s32.totalorder %s111, 1
              %s116 = sphi [#allocation3], [#allocation3]
              %s117 = sphi %s4, %s4
            $region55: #{tpu_custom_call.1} parent=51 // loop_header_branch
              %114 = sbr.rel (%p112) target = $region59
            $region56: #{tpu_custom_call.1} parent=51 // loop_body
              %v118 = vld [vmem:[%s116] sm:%s109]
              %119 = vst [vmem:[%s117] sm:%s109] %v118
            $region57: #{tpu_custom_call.1} parent=51 // loop_footer
              %s115 = sadd.s32 1, %s111
            $region58: #{tpu_custom_call.1} parent=51 // loop_footer_branch
              %110 = sbr.rel target = $region54
            $region59: #{tpu_custom_call.1} parent=51 // loop_exit
              _
          $region52: #{tpu_custom_call.1} parent=36 // pred_fallthru
            _
        $region37: #{tpu_custom_call.1} parent=32 // pred_fallthru
          _
        // Predicated region
        $region38: #{tpu_custom_call.1} parent=32 // pred_check
          _
        $region39: #{tpu_custom_call.1} parent=32 // pred_check_branch
          %93 = sbr.rel (0) target = $region41
        $region40: #{tpu_custom_call.1} parent=32 // pred_region
          %s95 = ssub.s32 4, 1
          loop: start=0, step=1, limit=1
          $region42: #{tpu_custom_call.1} parent=40 // loop_pre_header
            _
          $region43: #{tpu_custom_call.1} parent=40 // loop_header
            %s97 = sphi 0, %s101
            %p98 = scmp.ge.s32.totalorder %s97, 1
            %s102 = sphi [#allocation3], [#allocation3]
            %s103 = sphi %s4, %s4
          $region44: #{tpu_custom_call.1} parent=40 // loop_header_branch
            %100 = sbr.rel (%p98) target = $region48
          $region45: #{tpu_custom_call.1} parent=40 // loop_body
            %v104 = vld [vmem:[%s102] sm:%s95]
            %105 = vst [vmem:[%s103] sm:%s95] %v104
          $region46: #{tpu_custom_call.1} parent=40 // loop_footer
            %s101 = sadd.s32 1, %s97
          $region47: #{tpu_custom_call.1} parent=40 // loop_footer_branch
            %96 = sbr.rel target = $region43
          $region48: #{tpu_custom_call.1} parent=40 // loop_exit
            _
        $region41: #{tpu_custom_call.1} parent=32 // pred_fallthru
          _
      $region33: #{tpu_custom_call.1} parent=28 // pred_fallthru
        _
      %120 = vnop
    $region29: #{tpu_custom_call.1} parent=1 // pred_fallthru
      _
    // Predicated region
    $region60: #{tpu_custom_call.1} parent=1 // pred_check
      _
    $region61: #{tpu_custom_call.1} parent=1 // pred_check_branch
      %122 = sbr.rel (0) target = $region63
    $region62: #{tpu_custom_call.1} parent=1 // pred_region
      _
    $region63: #{tpu_custom_call.1} parent=1 // pred_fallthru
      _

</llo_original>
